<compile_context>
chip_gen: v5e
topology: v5e:2x2
jax: 0.10.0
libtpu: 0.0.40
codegen_flags: <defaults>
</compile_context>

<pallas_src>
import math

import jax
import jax.numpy as jnp
from jax.experimental import pallas as pl
from jax.experimental.pallas import tpu as pltpu

EMBED_DIM = 128                      # CLIP embedding width; exact 128 lanes
_EPS = 1e-12                         # F.normalize(p=2, dim=-1, eps=1e-12)
_VMEM_LIMIT = 32 * 1024 * 1024       # scoped VMEM limit, safe on all gens
_TILE_BUDGET = 24 * 1024 * 1024      # budget for double-buffered input tiles

# On chips with 2 TensorCores (v7x, v4 megacore) make sure the "parallel"
# batch axis has at least 2 tiles so both cores run the image path.
_MIN_BATCH_TILES = 1
try:
    _kind = jax.devices()[0].device_kind.lower()
    if ("v7" in _kind) or ("v4" in _kind):
        _MIN_BATCH_TILES = 2
except Exception:  # pragma: no cover - best effort only
    pass


def _cdiv(a, b):
    return -(-a // b)


def _round_up(x, m):
    return ((x + m - 1) // m) * m


def _plan_m(batch, tm_max=512, min_tiles=1):
    """Balanced batch tiling: TM multiple of 8, Bp = TM * n_tiles.

    Avoids the old min(tm_max, round_up(B,8)) pathology (B=130 -> Bp=256);
    min_tiles=2 shards the batch across both TensorCores on v7x/v4.
    """
    b8 = _round_up(max(batch, 1), 8)
    tiles = max(min_tiles, _cdiv(batch, tm_max))
    tiles = max(1, min(tiles, b8 // 8))          # keep TM >= 8
    tm = _round_up(_cdiv(batch, tiles), 8)
    return tm, tm * tiles


def _plan_k(feat, tm, x_bytes, d, tk_max=8192):
    """K tile: multiple of 128, sized so double-buffered (x tile + bf16 weight
    tile) stays under the VMEM budget, and chosen as a divisor of
    round_up(feat,128) whenever possible so no K-padding copy is needed."""
    f128 = _round_up(feat, 128)
    per_tk = 2 * (tm * x_bytes + d * 2)          # double-buffered bytes per unit K
    fit = max(128, (_TILE_BUDGET // per_tk) // 128 * 128)
    tk_cap = min(tk_max, fit)
    if f128 <= tk_cap:
        return f128, f128
    n, limit = f128 // 128, tk_cap // 128
    best, div = 1, 1
    while div * div <= n:
        if n % div == 0:
            if div <= limit:
                best = max(best, div)
            if (n // div) <= limit:
                best = max(best, n // div)
        div += 1
    if best * 128 >= min(1024, f128):            # decent divisor -> no K pad
        return best * 128, f128
    return tk_cap, _round_up(f128, tk_cap)       # degenerate: pad ragged tail


def _l2_normalize(z):
    """z / max(||z||_2, eps) == z * rsqrt(max(sum(z^2), eps^2)) — one EUP op."""
    ssq = jnp.sum(z * z, axis=-1, keepdims=True)
    return z * jax.lax.rsqrt(jnp.maximum(ssq, _EPS * _EPS))


# ---------------------------------------------------------------------------
# Kernel 1: tiled (batch, K) matmul + bias + L2 normalize (image encoder).
# The f32 output block is the accumulator (constant block index across k).
# ---------------------------------------------------------------------------
def _matmul_bias_l2norm_kernel(x_ref, w_ref, b_ref, o_ref):
    k = pl.program_id(1)

    @pl.when(k == 0)
    def _init():
        o_ref[...] = jnp.zeros_like(o_ref)

    o_ref[...] += jnp.dot(x_ref[...].astype(jnp.bfloat16), w_ref[...],
                          preferred_element_type=jnp.float32)

    @pl.when(k == pl.num_programs(1) - 1)
    def _finalize():
        z = o_ref[...] + b_ref[...]              # bias is (1, D), broadcasts
        o_ref[...] = _l2_normalize(z).astype(o_ref.dtype)


def encode_and_normalize(x, w_bf16, b, *, tm_max=512, tk_max=8192,
                         min_batch_tiles=_MIN_BATCH_TILES):
    """x: [B, F] float, w_bf16: [Fw >= F, D] bf16, b: [1, D] f32.
    Returns L2-normalized [B, D] f32."""
    B, F = x.shape
    Fw, D = w_bf16.shape
    assert F <= Fw and b.shape == (1, D)

    TM, Bp = _plan_m(B, tm_max, min_batch_tiles)
    TK, Fp = _plan_k(F, TM, x.dtype.itemsize, D, tk_max)

    # Pad only ragged tails (single op; usually batch tail only, or a no-op).
    x_pad = x if (Bp, Fp) == (B, F) else jnp.pad(x, ((0, Bp - B), (0, Fp - F)))
    if Fw < Fp:
        w_pad = jnp.pad(w_bf16, ((0, Fp - Fw), (0, 0)))
    elif Fw > Fp:
        w_pad = w_bf16[:Fp]
    else:
        w_pad = w_bf16

    nb, nk = Bp // TM, Fp // TK

    out = pl.pallas_call(
        _matmul_bias_l2norm_kernel,
        out_shape=jax.ShapeDtypeStruct((Bp, D), jnp.float32),
        grid=(nb, nk),
        in_specs=[
            pl.BlockSpec((TM, TK), lambda i, k: (i, k)),
            pl.BlockSpec((TK, D), lambda i, k: (k, 0)),
            pl.BlockSpec((1, D), lambda i, k: (0, 0)),
        ],
        out_specs=pl.BlockSpec((TM, D), lambda i, k: (i, 0)),
        compiler_params=pltpu.CompilerParams(
            dimension_semantics=("parallel", "arbitrary"),
            vmem_limit_bytes=_VMEM_LIMIT,
        ),
        cost_estimate=pl.CostEstimate(
            flops=2 * Bp * Fp * D,
            transcendentals=Bp,
            bytes_accessed=(Bp * Fp * x.dtype.itemsize      # activations (once)
                            + nb * Fp * D * 2               # weights per batch tile
                            + Bp * D * 4 + D * 4),
        ),
    )(x_pad, w_pad, b)
    return out[:B]


# ---------------------------------------------------------------------------
# Kernel 2: fused dna + language encoders. One launch, two small matmuls,
# single lane-dense (TM, 2*D) output block (dna cols 0:D, language cols D:2D).
# ---------------------------------------------------------------------------
def _pair_encode_l2norm_kernel(xa_ref, wa_ref, ba_ref,
                               xb_ref, wb_ref, bb_ref, o_ref):
    d = wa_ref.shape[1]
    za = jnp.dot(xa_ref[...].astype(jnp.bfloat16), wa_ref[...],
                 preferred_element_type=jnp.float32) + ba_ref[...]
    zb = jnp.dot(xb_ref[...].astype(jnp.bfloat16), wb_ref[...],
                 preferred_element_type=jnp.float32) + bb_ref[...]
    o_ref[:, :d] = _l2_normalize(za).astype(o_ref.dtype)
    o_ref[:, d:] = _l2_normalize(zb).astype(o_ref.dtype)


def encode_pair_and_normalize(x_a, w_a, b_a, x_b, w_b, b_b, *, tm_max=512,
                              min_batch_tiles=_MIN_BATCH_TILES):
    """x_a: [B, Fa], x_b: [B, Fb]; w_*: [F*, D] bf16; b_*: [1, D] f32.
    Returns two L2-normalized [B, D] f32 arrays (one launch for both)."""
    B = x_a.shape[0]
    assert x_b.shape[0] == B
    Fa, D = w_a.shape
    Fb, Db = w_b.shape
    assert D == Db and x_a.shape[1] == Fa and x_b.shape[1] == Fb

    TM, Bp = _plan_m(B, tm_max, min_batch_tiles)
    xa = x_a if Bp == B else jnp.pad(x_a, ((0, Bp - B), (0, 0)))
    xb = x_b if Bp == B else jnp.pad(x_b, ((0, Bp - B), (0, 0)))
    nb = Bp // TM

    out = pl.pallas_call(
        _pair_encode_l2norm_kernel,
        out_shape=jax.ShapeDtypeStruct((Bp, 2 * D), jnp.float32),
        grid=(nb,),
        in_specs=[
            pl.BlockSpec((TM, Fa), lambda i: (i, 0)),
            pl.BlockSpec((Fa, D), lambda i: (0, 0)),
            pl.BlockSpec((1, D), lambda i: (0, 0)),
            pl.BlockSpec((TM, Fb), lambda i: (i, 0)),
            pl.BlockSpec((Fb, D), lambda i: (0, 0)),
            pl.BlockSpec((1, D), lambda i: (0, 0)),
        ],
        out_specs=pl.BlockSpec((TM, 2 * D), lambda i: (i, 0)),
        compiler_params=pltpu.CompilerParams(
            dimension_semantics=("parallel",),
            vmem_limit_bytes=_VMEM_LIMIT,
        ),
        cost_estimate=pl.CostEstimate(
            flops=2 * Bp * (Fa + Fb) * D,
            transcendentals=2 * Bp,
            bytes_accessed=(Bp * (Fa + Fb) * x_a.dtype.itemsize
                            + nb * (Fa + Fb) * D * 2
                            + Bp * 2 * D * 4 + 2 * D * 4),
        ),
    )(xa, w_a, b_a, xb, w_b, b_b)
    return out[:B, :D], out[:B, D:]


# ---------------------------------------------------------------------------
# Model: JAX/Pallas re-implementation of SimpleCLIP.forward (open_clip path
# off; synthetic linear encoders stand in for the injected encoder modules).
# ---------------------------------------------------------------------------
class SimpleCLIPPallas:

    def __init__(self, key, image_feat_dim, dna_feat_dim, lang_feat_dim,
                 embed_dim=EMBED_DIM,
                 init_logit_scale=math.log(1 / 0.07),
                 init_logit_bias=None):
        k1, k2, k3, k4, k5, k6 = jax.random.split(key, 6)
        s = 0.02

        def linear_init(kw, kb, fan_in):
            w = jax.random.normal(kw, (fan_in, embed_dim), jnp.float32) * s
            b = jax.random.normal(kb, (1, embed_dim), jnp.float32) * s
            return w, b

        image_w, image_b = linear_init(k1, k2, image_feat_dim)
        dna_w, dna_b = linear_init(k3, k4, dna_feat_dim)
        lang_w, lang_b = linear_init(k5, k6, lang_feat_dim)

        self.embed_dim = embed_dim
        self.image_feat_dim = image_feat_dim
        self.dna_feat_dim = dna_feat_dim
        self.lang_feat_dim = lang_feat_dim

        # Image encoder weights: bf16, pre-padded once to a multiple of 128 so
        # the usual TK | round_up(F,128) plan needs no per-call weight re-pad.
        f128_img = _round_up(image_feat_dim, 128)
        if f128_img != image_feat_dim:
            self.image_w = jnp.pad(image_w.astype(jnp.bfloat16),
                                   ((0, f128_img - image_feat_dim), (0, 0)))
        else:
            self.image_w = image_w.astype(jnp.bfloat16)
        self.image_b = image_b

        # Small-encoder weights (dna / language), unpadded bf16.
        self.dna_w = dna_w.astype(jnp.bfloat16)
        self.dna_b = dna_b
        self.lang_w = lang_w.astype(jnp.bfloat16)
        self.lang_b = lang_b

        # nn.Parameter(torch.ones([]) * init_logit_scale)
        self.logit_scale = jnp.asarray(init_logit_scale, jnp.float32)
        self.logit_bias = (jnp.asarray(init_logit_bias, jnp.float32)
                           if init_logit_bias is not None else None)

    def forward(self, image_input, dna_input, language_input):
        image_output = None
        dna_output = None
        language_output = None

        # dna + language fused into one kernel launch when both are present.
        if dna_input is not None and language_input is not None:
            dna_output, language_output = encode_pair_and_normalize(
                dna_input, self.dna_w, self.dna_b,
                language_input, self.lang_w, self.lang_b)
        else:
            if dna_input is not None:
                dna_output = encode_and_normalize(
                    dna_input, self.dna_w, self.dna_b)
            if language_input is not None:
                language_output = encode_and_normalize(
                    language_input, self.lang_w, self.lang_b)

        if image_input is not None:
            B = image_input.shape[0]
            x = image_input.reshape(B, -1)     # NCHW -> [B, C*H*W] (glue)
            image_output = encode_and_normalize(x, self.image_w, self.image_b)

        # scalar exp is glue, not a hot path
        return (image_output, dna_output, language_output,
                jnp.exp(self.logit_scale), self.logit_bias)


# TODO(synk): the open_clip encode_image/encode_text + tokenizer branch of the
# original module is an external pretrained model and has no Pallas equivalent
# here; only the injected-encoder branch is implemented (with synthetic linear
# encoders standing in for the injected nn.Modules).


if __name__ == "__main__":
    key = jax.random.PRNGKey(0)
    k_img, k_dna, k_lang, k_params = jax.random.split(key, 4)

    # Small shapes consistent with the module's forward.
    B, C, H, W = 2, 4, 16, 16          # image_input: NCHW
    DNA_FEAT = 64                       # dna_input:  [B, 64]
    LANG_FEAT = 32                      # language_input: [B, 32]

    image_input = jax.random.normal(k_img, (B, C, H, W), jnp.float32)
    dna_input = jax.random.normal(k_dna, (B, DNA_FEAT), jnp.float32)
    language_input = jax.random.normal(k_lang, (B, LANG_FEAT), jnp.float32)

    model = SimpleCLIPPallas(
        k_params,
        image_feat_dim=C * H * W,
        dna_feat_dim=DNA_FEAT,
        lang_feat_dim=LANG_FEAT,
    )

    img_out, dna_out, lang_out, scale, bias = model.forward(
        image_input, dna_input, language_input)
    jax.block_until_ready((img_out, dna_out, lang_out, scale))

    # Pure-JAX reference (same bf16 weight/input quantization, f32 math).
    def ref_encode(x, w_bf16, b, feat_dim):
        xq = x.astype(jnp.bfloat16).astype(jnp.float32)
        w = w_bf16[:feat_dim, :].astype(jnp.float32)
        z = xq @ w + b
        n = jnp.sqrt(jnp.sum(z * z, axis=-1, keepdims=True))
        return z / jnp.maximum(n, _EPS)

    ref_img = ref_encode(image_input.reshape(B, -1), model.image_w,
                         model.image_b, C * H * W)
    ref_dna = ref_encode(dna_input, model.dna_w, model.dna_b, DNA_FEAT)
    ref_lang = ref_encode(language_input, model.lang_w, model.lang_b, LANG_FEAT)

    for name, out, ref in (("image", img_out, ref_img),
                           ("dna", dna_out, ref_dna),
                           ("lang", lang_out, ref_lang)):
        norms = jnp.linalg.norm(out, axis=-1)
        assert jnp.allclose(norms, 1.0, atol=1e-3), (name, norms)
        assert jnp.allclose(out, ref, atol=2e-2, rtol=2e-2), (
            name, float(jnp.max(jnp.abs(out - ref))))

    assert jnp.allclose(scale, jnp.exp(jnp.asarray(math.log(1 / 0.07)))), scale
    assert bias is None  # init_logit_bias defaults to None

    print("KERNEL_OK")
</pallas_src>

<mosaic_0001>
module attributes {stable_mosaic.version = 11 : i64} {
  func.func @_pair_encode_l2norm_kernel(%arg0: i32, %arg1: memref<8x64xf32, #tpu.memory_space<vmem>>, %arg2: memref<64x128xbf16, #tpu.memory_space<vmem>>, %arg3: memref<1x128xf32, #tpu.memory_space<vmem>>, %arg4: memref<8x32xf32, #tpu.memory_space<vmem>>, %arg5: memref<32x128xbf16, #tpu.memory_space<vmem>>, %arg6: memref<1x128xf32, #tpu.memory_space<vmem>>, %arg7: memref<8x256xf32, #tpu.memory_space<vmem>>) attributes {dimension_semantics = [#tpu.dimension_semantics<parallel>], iteration_bounds = array<i64: 1>, scalar_prefetch = 0 : i64, scratch_operands = 0 : i64, tpu.core_type = #tpu.core_type<tc>, window_params = [{transform_indices = @transform_0, window_bounds = array<i64: 8, 64>}, {pipeline_mode = #tpu.pipeline_mode<synchronous>, transform_indices = @transform_1, window_bounds = array<i64: 64, 128>}, {pipeline_mode = #tpu.pipeline_mode<synchronous>, transform_indices = @transform_2, window_bounds = array<i64: 1, 128>}, {transform_indices = @transform_3, window_bounds = array<i64: 8, 32>}, {pipeline_mode = #tpu.pipeline_mode<synchronous>, transform_indices = @transform_4, window_bounds = array<i64: 32, 128>}, {pipeline_mode = #tpu.pipeline_mode<synchronous>, transform_indices = @transform_5, window_bounds = array<i64: 1, 128>}, {transform_indices = @transform_6, window_bounds = array<i64: 8, 256>}]} {
    %c0 = arith.constant 0 : index
    %c0_0 = arith.constant 0 : index
    %0 = vector.load %arg1[%c0, %c0_0] : memref<8x64xf32, #tpu.memory_space<vmem>>, vector<8x64xf32>
    %1 = arith.truncf %0 : vector<8x64xf32> to vector<8x64xbf16>
    %c0_1 = arith.constant 0 : index
    %c0_2 = arith.constant 0 : index
    %2 = vector.load %arg2[%c0_1, %c0_2] : memref<64x128xbf16, #tpu.memory_space<vmem>>, vector<64x128xbf16>
    %cst = arith.constant dense<0.000000e+00> : vector<8x128xf32>
    %3 = tpu.matmul %1, %2, %cst {dimension_numbers = #tpu.dot_dimension_numbers<[1], [0], [0], [1], [0, 0, 1, 1], [], []>} : vector<8x64xbf16>, vector<64x128xbf16>, vector<8x128xf32> -> vector<8x128xf32>
    %c0_3 = arith.constant 0 : index
    %c0_4 = arith.constant 0 : index
    %4 = vector.load %arg3[%c0_3, %c0_4] : memref<1x128xf32, #tpu.memory_space<vmem>>, vector<1x128xf32>
    %5 = vector.broadcast %4 : vector<1x128xf32> to vector<8x128xf32>
    %6 = arith.addf %3, %5 : vector<8x128xf32>
    %c0_5 = arith.constant 0 : index
    %c0_6 = arith.constant 0 : index
    %7 = vector.load %arg4[%c0_5, %c0_6] : memref<8x32xf32, #tpu.memory_space<vmem>>, vector<8x32xf32>
    %8 = arith.truncf %7 : vector<8x32xf32> to vector<8x32xbf16>
    %c0_7 = arith.constant 0 : index
    %c0_8 = arith.constant 0 : index
    %9 = vector.load %arg5[%c0_7, %c0_8] : memref<32x128xbf16, #tpu.memory_space<vmem>>, vector<32x128xbf16>
    %cst_9 = arith.constant dense<0.000000e+00> : vector<8x128xf32>
    %10 = tpu.matmul %8, %9, %cst_9 {dimension_numbers = #tpu.dot_dimension_numbers<[1], [0], [0], [1], [0, 0, 1, 1], [], []>} : vector<8x32xbf16>, vector<32x128xbf16>, vector<8x128xf32> -> vector<8x128xf32>
    %c0_10 = arith.constant 0 : index
    %c0_11 = arith.constant 0 : index
    %11 = vector.load %arg6[%c0_10, %c0_11] : memref<1x128xf32, #tpu.memory_space<vmem>>, vector<1x128xf32>
    %12 = vector.broadcast %11 : vector<1x128xf32> to vector<8x128xf32>
    %13 = arith.addf %10, %12 : vector<8x128xf32>
    %14 = arith.mulf %6, %6 : vector<8x128xf32>
    %cst_12 = arith.constant dense<0.000000e+00> : vector<8xf32>
    %15 = vector.multi_reduction <add>, %14, %cst_12 [1] : vector<8x128xf32> to vector<8xf32>
    %16 = vector.shape_cast %15 : vector<8xf32> to vector<8x1xf32>
    %cst_13 = arith.constant 1.000000e-24 : f32
    %17 = vector.broadcast %cst_13 : f32 to vector<8x1xf32>
    %18 = arith.maximumf %16, %17 : vector<8x1xf32>
    %19 = math.rsqrt %18 : vector<8x1xf32>
    %20 = vector.broadcast %19 : vector<8x1xf32> to vector<8x128xf32>
    %21 = arith.mulf %6, %20 : vector<8x128xf32>
    %c0_14 = arith.constant 0 : index
    %c0_15 = arith.constant 0 : index
    %22 = vector.load %arg7[%c0_14, %c0_15] : memref<8x256xf32, #tpu.memory_space<vmem>>, vector<8x128xf32>
    tpu.vector_store %arg7[%c0_14, %c0_15], %21 {strides = array<i32>} : memref<8x256xf32, #tpu.memory_space<vmem>>, vector<8x128xf32>,
    %23 = arith.mulf %13, %13 : vector<8x128xf32>
    %cst_16 = arith.constant dense<0.000000e+00> : vector<8xf32>
    %24 = vector.multi_reduction <add>, %23, %cst_16 [1] : vector<8x128xf32> to vector<8xf32>
    %25 = vector.shape_cast %24 : vector<8xf32> to vector<8x1xf32>
    %cst_17 = arith.constant 1.000000e-24 : f32
    %26 = vector.broadcast %cst_17 : f32 to vector<8x1xf32>
    %27 = arith.maximumf %25, %26 : vector<8x1xf32>
    %28 = math.rsqrt %27 : vector<8x1xf32>
    %29 = vector.broadcast %28 : vector<8x1xf32> to vector<8x128xf32>
    %30 = arith.mulf %13, %29 : vector<8x128xf32>
    %c0_18 = arith.constant 0 : index
    %c128 = arith.constant 128 : index
    %31 = vector.load %arg7[%c0_18, %c128] : memref<8x256xf32, #tpu.memory_space<vmem>>, vector<8x128xf32>
    tpu.vector_store %arg7[%c0_18, %c128], %30 {strides = array<i32>} : memref<8x256xf32, #tpu.memory_space<vmem>>, vector<8x128xf32>,
    return
  }
  func.func @transform_0(%arg0: i32) -> (i32, i32) {
    %c0_i32 = arith.constant 0 : i32
    %c0_i32_0 = arith.constant 0 : i32
    return %arg0, %c0_i32 : i32, i32
  }
  func.func @transform_1(%arg0: i32) -> (i32, i32) {
    %c0_i32 = arith.constant 0 : i32
    %c0_i32_0 = arith.constant 0 : i32
    %c0_i32_1 = arith.constant 0 : i32
    return %c0_i32, %c0_i32_0 : i32, i32
  }
  func.func @transform_2(%arg0: i32) -> (i32, i32) {
    %c0_i32 = arith.constant 0 : i32
    %c0_i32_0 = arith.constant 0 : i32
    %c0_i32_1 = arith.constant 0 : i32
    return %c0_i32, %c0_i32_0 : i32, i32
  }
  func.func @transform_3(%arg0: i32) -> (i32, i32) {
    %c0_i32 = arith.constant 0 : i32
    %c0_i32_0 = arith.constant 0 : i32
    return %arg0, %c0_i32 : i32, i32
  }
  func.func @transform_4(%arg0: i32) -> (i32, i32) {
    %c0_i32 = arith.constant 0 : i32
    %c0_i32_0 = arith.constant 0 : i32
    %c0_i32_1 = arith.constant 0 : i32
    return %c0_i32, %c0_i32_0 : i32, i32
  }
  func.func @transform_5(%arg0: i32) -> (i32, i32) {
    %c0_i32 = arith.constant 0 : i32
    %c0_i32_0 = arith.constant 0 : i32
    %c0_i32_1 = arith.constant 0 : i32
    return %c0_i32, %c0_i32_0 : i32, i32
  }
  func.func @transform_6(%arg0: i32) -> (i32, i32) {
    %c0_i32 = arith.constant 0 : i32
    %c0_i32_0 = arith.constant 0 : i32
    return %arg0, %c0_i32 : i32, i32
  }
}

</mosaic_0001>

<llo_original>
// kernel: tpu_custom_call.1
$region0: #{tpu_custom_call.1}
  #allocation0 [shape = 'u32[]', space=smem, size = 0x4, offset = 0x4, fixed_abs, tag = 'smem constant byte address 0x4 - core index']
  #allocation1 [shape = 'u32[72,128]{1,0:T(1,128)}', space=vmem, size = 0x9000, scoped, tag = 'internal scratch']
  %s0 = inlined_call_operand.hbm [shape: f32[8,64], index: 0, kind: input, shape index: {}]
  %s1 = inlined_call_operand.hbm [shape: bf16[64,128], index: 1, kind: input, shape index: {}]
  %s2 = inlined_call_operand.vmem [shape: f32[1,128], index: 2, kind: input, shape index: {}]
  %s3 = inlined_call_operand.hbm [shape: f32[8,32], index: 3, kind: input, shape index: {}]
  %s4 = inlined_call_operand.hbm [shape: bf16[32,128], index: 4, kind: input, shape index: {}]
  %s5 = inlined_call_operand.vmem [shape: f32[1,128], index: 5, kind: input, shape index: {}]
  %s6 = inlined_call_operand.hbm [shape: f32[8,256], index: 6, kind: output, shape index: {}]
  %s7 = sld [smem:[#allocation0]]
  $region50: #{tpu_custom_call.1} parent=0
    _
  %s9 = ssub.s32 1, %s7
  %s10 = scalar_select 0, %s9, %s7
  $region1: #{tpu_custom_call.1} parent=0
    #allocation2 [shape = 'u8[4096]{0}', space=vmem, size = 0x1000, scoped, tag = 'input window, operand 0, single buffered']
    #allocation3 [shape = 's32[1]{0}', space=sflag, size = 0x4, scoped, tag = 'scoped memory for tpu_custom_call.1']
    #allocation4 [shape = 's32[1]{0}', space=sflag, size = 0x4, scoped, tag = 'scoped memory for tpu_custom_call.1']
    #allocation5 [shape = 'u8[16384]{0}', space=vmem, size = 0x4000, scoped, tag = 'input window, operand 1, single buffered']
    #allocation6 [shape = 's32[1]{0}', space=sflag, size = 0x4, scoped, tag = 'scoped memory for tpu_custom_call.1']
    #allocation7 [shape = 'u8[4096]{0}', space=vmem, size = 0x1000, scoped, tag = 'input window, operand 3, single buffered']
    #allocation8 [shape = 'u8[8192]{0}', space=vmem, size = 0x2000, scoped, tag = 'input window, operand 4, single buffered']
    #allocation9 [shape = 's32[1]{0}', space=sflag, size = 0x4, scoped, tag = 'scoped memory for tpu_custom_call.1']
    #allocation10 [shape = 'u8[8192]{0}', space=vmem, size = 0x2000, scoped, tag = 'output window, operand 0, single buffered']
    %11 = vsyncpa [#allocation3], 0
    %12 = vsyncpa [#allocation6], 0
    %13 = vsyncpa [#allocation9], 0
    %14 = vsyncpa [#allocation4], 0
    // Predicated region
    $region2: #{tpu_custom_call.1} parent=1 // pred_check
      _
    $region3: #{tpu_custom_call.1} parent=1 // pred_check_branch
      %16 = sbr.rel (0) target = $region5
    $region4: #{tpu_custom_call.1} parent=1 // pred_region
      %18 = vsyncadd [#allocation3], 0
      %s20 = sshll.u32 %s0, 4
      %s21 = int_to_ptr.hbm [resolvable:$true] %s20
      %s22 = sshll.u32 [#allocation2], 4
      %s23 = int_to_ptr.vmem [resolvable:$true] %s22
      %25 = dma.hbm_to_vmem [thread:$0]  %s21, 128, %s23, [#allocation3]
    $region5: #{tpu_custom_call.1} parent=1 // pred_fallthru
      _
    // Predicated region
    $region6: #{tpu_custom_call.1} parent=1 // pred_check
      _
    $region7: #{tpu_custom_call.1} parent=1 // pred_check_branch
      %27 = sbr.rel (0) target = $region9
    $region8: #{tpu_custom_call.1} parent=1 // pred_region
      %29 = vsyncadd [#allocation6], 0
      %s30 = sshll.u32 %s1, 4
      %s31 = int_to_ptr.hbm [resolvable:$true] %s30
      %s32 = sshll.u32 [#allocation5], 4
      %s33 = int_to_ptr.vmem [resolvable:$true] %s32
      %38 = dma.hbm_to_vmem [thread:$0]  %s31, 512, %s33, [#allocation6], 64, 64, 4
    $region9: #{tpu_custom_call.1} parent=1 // pred_fallthru
      _
    // Predicated region
    $region10: #{tpu_custom_call.1} parent=1 // pred_check
      _
    $region11: #{tpu_custom_call.1} parent=1 // pred_check_branch
      %40 = sbr.rel (0) target = $region13
    $region12: #{tpu_custom_call.1} parent=1 // pred_region
      _
    $region13: #{tpu_custom_call.1} parent=1 // pred_fallthru
      _
    // Predicated region
    $region14: #{tpu_custom_call.1} parent=1 // pred_check
      _
    $region15: #{tpu_custom_call.1} parent=1 // pred_check_branch
      %42 = sbr.rel (0) target = $region17
    $region16: #{tpu_custom_call.1} parent=1 // pred_region
      %44 = vsyncadd [#allocation6], 0
      %s46 = sshll.u32 %s3, 4
      %s47 = int_to_ptr.hbm [resolvable:$true] %s46
      %s48 = sshll.u32 [#allocation7], 4
      %s49 = int_to_ptr.vmem [resolvable:$true] %s48
      %51 = dma.hbm_to_vmem [thread:$0]  %s47, 128, %s49, [#allocation6]
    $region17: #{tpu_custom_call.1} parent=1 // pred_fallthru
      _
    // Predicated region
    $region18: #{tpu_custom_call.1} parent=1 // pred_check
      _
    $region19: #{tpu_custom_call.1} parent=1 // pred_check_branch
      %53 = sbr.rel (0) target = $region21
    $region20: #{tpu_custom_call.1} parent=1 // pred_region
      %55 = vsyncadd [#allocation9], 0
      %s56 = sshll.u32 %s4, 4
      %s57 = int_to_ptr.hbm [resolvable:$true] %s56
      %s58 = sshll.u32 [#allocation8], 4
      %s59 = int_to_ptr.vmem [resolvable:$true] %s58
      %64 = dma.hbm_to_vmem [thread:$0]  %s57, 256, %s59, [#allocation9], 64, 64, 4
    $region21: #{tpu_custom_call.1} parent=1 // pred_fallthru
      _
    // Predicated region
    $region22: #{tpu_custom_call.1} parent=1 // pred_check
      _
    $region23: #{tpu_custom_call.1} parent=1 // pred_check_branch
      %66 = sbr.rel (0) target = $region25
    $region24: #{tpu_custom_call.1} parent=1 // pred_region
      _
    $region25: #{tpu_custom_call.1} parent=1 // pred_fallthru
      _
    // Predicated region
    $region26: #{tpu_custom_call.1} parent=1 // pred_check
      _
    $region27: #{tpu_custom_call.1} parent=1 // pred_check_branch
      %68 = sbr.rel (0) target = $region29
    $region28: #{tpu_custom_call.1} parent=1 // pred_region
      %70 = dma.done [#allocation3], 128
    $region29: #{tpu_custom_call.1} parent=1 // pred_fallthru
      _
    // Predicated region
    $region30: #{tpu_custom_call.1} parent=1 // pred_check
      _
    $region31: #{tpu_custom_call.1} parent=1 // pred_check_branch
      %72 = sbr.rel (0) target = $region33
    $region32: #{tpu_custom_call.1} parent=1 // pred_region
      %74 = dma.done [#allocation6], 512
    $region33: #{tpu_custom_call.1} parent=1 // pred_fallthru
      _
    // Predicated region
    $region34: #{tpu_custom_call.1} parent=1 // pred_check
      _
    $region35: #{tpu_custom_call.1} parent=1 // pred_check_branch
      %76 = sbr.rel (0) target = $region37
    $region36: #{tpu_custom_call.1} parent=1 // pred_region
      %78 = dma.done [#allocation6], 128
    $region37: #{tpu_custom_call.1} parent=1 // pred_fallthru
      _
    // Predicated region
    $region38: #{tpu_custom_call.1} parent=1 // pred_check
      _
    $region39: #{tpu_custom_call.1} parent=1 // pred_check_branch
      %80 = sbr.rel (0) target = $region41
    $region40: #{tpu_custom_call.1} parent=1 // pred_region
      %82 = dma.done [#allocation9], 256
    $region41: #{tpu_custom_call.1} parent=1 // pred_fallthru
      _
    %v84 = vld [vmem:[#allocation2] sm:$0xff]
    %v85 = vpack.c.bf16 %v84, %v84
    %v86 = vld [vmem:[#allocation5] sm:$0xf]
    %v87 = vld [vmem:[#allocation5 + $0x4] sm:$0xf]
    %v88 = vld [vmem:[#allocation5 + $0x8] sm:$0xf]
    %v89 = vld [vmem:[#allocation5 + $0xc] sm:$0xf]
    %v90 = vld [vmem:[#allocation5 + $0x10] sm:$0xf]
    %v91 = vld [vmem:[#allocation5 + $0x14] sm:$0xf]
    %v92 = vld [vmem:[#allocation5 + $0x18] sm:$0xf]
    %v93 = vld [vmem:[#allocation5 + $0x1c] sm:$0xf]
    %v94 = vld [vmem:[%s2] sm:$0x1]
    %v96 = vperm.slane %v94, 0
    %v106 = vunpack.c.l.b16 %v86
    %v107 = vunpack.c.l.b16 %v87
    %v108 = vunpack.c.l.b16 %v88
    %v109 = vunpack.c.l.b16 %v89
    %v110 = vunpack.c.l.b16 %v90
    %v111 = vunpack.c.l.b16 %v91
    %v112 = vunpack.c.l.b16 %v92
    %v113 = vunpack.c.l.b16 %v93
    %v114 = vpack.c.b16 %v107, %v106
    %v115 = vpack.c.b16 %v109, %v108
    %v116 = vpack.c.b16 %v111, %v110
    %v117 = vpack.c.b16 %v113, %v112
    %vm122 = vcmask 523264
    %v124 = vsel %vm122, %v85, 0
    %126 = vmatpush.bf16.msra.mxu0 0
    %127 = vmatpush.bf16.msra.mxu0 0
    %128 = vmatpush.bf16.msra.mxu0 0
    %129 = vmatpush.bf16.msra.mxu0 0
    %130 = vmatpush.bf16.msra.mxu0 %v117
    %131 = vmatpush.bf16.msra.mxu0 %v116
    %132 = vmatpush.bf16.msra.mxu0 %v115
    %133 = vmatpush.bf16.msra.mxu0 %v114
    %134 = vmatmul.bf16.gmra.mxu0 %v124
    %v135 = vpop.f32.mrf.mxu0
    %v136 = vadd.f32 %v96, %v135
    %v137 = vpop.f32.mrf.mxu0
    %138 = vdwg.mxu0
    %v139 = vld [vmem:[#allocation7] sm:$0xff]
    %v140 = vpack.c.bf16 %v139, %v139
    %v141 = vld [vmem:[#allocation8] sm:$0xf]
    %v142 = vld [vmem:[#allocation8 + $0x4] sm:$0xf]
    %v143 = vld [vmem:[#allocation8 + $0x8] sm:$0xf]
    %v144 = vld [vmem:[#allocation8 + $0xc] sm:$0xf]
    %v145 = vld [vmem:[%s5] sm:$0x1]
    %v147 = vperm.slane %v145, 0
    %v153 = vunpack.c.l.b16 %v141
    %v154 = vunpack.c.l.b16 %v142
    %v155 = vunpack.c.l.b16 %v143
    %v156 = vunpack.c.l.b16 %v144
    %v157 = vpack.c.b16 %v154, %v153
    %v158 = vpack.c.b16 %v156, %v155
    %vm161 = vcmask 261120
    %v163 = vsel %vm161, %v140, 0
    %165 = vmatpush.bf16.msra.mxu0 0
    %166 = vmatpush.bf16.msra.mxu0 0
    %167 = vmatpush.bf16.msra.mxu0 0
    %168 = vmatpush.bf16.msra.mxu0 0
    %169 = vmatpush.bf16.msra.mxu0 0
    %170 = vmatpush.bf16.msra.mxu0 0
    %171 = vmatpush.bf16.msra.mxu0 %v158
    %172 = vmatpush.bf16.msra.mxu0 %v157
    %173 = vmatmul.bf16.gmra.mxu0 %v163
    %v174 = vpop.f32.mrf.mxu0
    %v175 = vadd.f32 %v147, %v174
    %v176 = vpop.f32.mrf.mxu0
    %177 = vdwg.mxu0
    %v178 = vmul.f32 %v136, %v136
    %179 = vadd.xlane.f32.xlu0 %v178
    %v180 = vpop.xlane.xlu0 %179
    %v181 = vmax.f32 %v180, 1e-24
    %v182 = vrsqrt.pop %v181
    %v183 = vmul.f32 %v182, %v181
    %v184 = vmul.f32 %v183, %v182
    %v185 = vmul.f32 0.5, %v184
    %v186 = vsub.f32 1.5, %v185
    %v187 = vmul.f32 %v182, %v186
    %vm188 = vweird.f32 %v181
    %vm189 = vweird.f32 %v182
    %vm190 = vmor %vm188, %vm189
    %v191 = vsel %vm190, %v182, %v187
    %v192 = vmul.f32 %v136, %v191
    %193 = vst [vmem:[#allocation10] sm:$0xff] %v192
    %v194 = vmul.f32 %v175, %v175
    %195 = vadd.xlane.f32.xlu0 %v194
    %v196 = vpop.xlane.xlu0 %195
    %v197 = vmax.f32 %v196, 1e-24
    %v198 = vrsqrt.pop %v197
    %v199 = vmul.f32 %v198, %v197
    %v200 = vmul.f32 %v199, %v198
    %v201 = vmul.f32 0.5, %v200
    %v202 = vsub.f32 1.5, %v201
    %v203 = vmul.f32 %v198, %v202
    %vm204 = vweird.f32 %v197
    %vm205 = vweird.f32 %v198
    %vm206 = vmor %vm204, %vm205
    %v207 = vsel %vm206, %v198, %v203
    %v208 = vmul.f32 %v175, %v207
    %209 = vst [vmem:[#allocation10 + $0x8] sm:$0xff] %v208
    // Predicated region
    $region42: #{tpu_custom_call.1} parent=1 // pred_check
      _
    $region43: #{tpu_custom_call.1} parent=1 // pred_check_branch
      %211 = sbr.rel (0) target = $region45
    $region44: #{tpu_custom_call.1} parent=1 // pred_region
      %213 = vsyncadd [#allocation4], 0
      %s215 = sshll.u32 [#allocation10], 4
      %s216 = int_to_ptr.vmem [resolvable:$true] %s215
      %s217 = sshll.u32 %s6, 4
      %s218 = int_to_ptr.hbm [resolvable:$true] %s217
      %220 = dma.vmem_to_hbm [thread:$0]  %s216, 256, %s218, [#allocation4]
    $region45: #{tpu_custom_call.1} parent=1 // pred_fallthru
      _
    // Predicated region
    $region46: #{tpu_custom_call.1} parent=1 // pred_check
      _
    $region47: #{tpu_custom_call.1} parent=1 // pred_check_branch
      %222 = sbr.rel (0) target = $region49
    $region48: #{tpu_custom_call.1} parent=1 // pred_region
      %224 = dma.done [#allocation4], 256
    $region49: #{tpu_custom_call.1} parent=1 // pred_fallthru
      _
    %225 = vsyncpa [#allocation3], 1
    %226 = vsyncpa [#allocation6], 1
    %227 = vsyncpa [#allocation9], 1
    %228 = vsyncpa [#allocation4], 1

</llo_original>
